<compile_context>
chip_gen: v7x
topology: tpu7x:2x2x1
jax: 0.10.0
libtpu: 0.0.40
codegen_flags: <defaults>
</compile_context>

<pallas_src>
import jax
import jax.numpy as jnp
from jax import lax
from jax.experimental import pallas as pl
from jax.experimental.pallas import tpu as pltpu


_DEFAULT_VMEM_BUDGET = 10 * 1024 * 1024  # fits v5e's 16 MiB scoped default


def _minloss_kernel(pred_ref, target_ref, vals_ref, idx_ref):
    """pred_ref/target_ref: [tile_b, tile_m, 128]; vals/idx: [tile_m, 128].

    Running (min, argmin) over the leading (batch) axis.  The outputs are
    VMEM-resident accumulators across the trailing (batch-chunk) grid axis.
    """
    kb = pl.program_id(1)                       # batch-chunk index (reduction axis)
    tile_b = pred_ref.shape[0]
    b_base = kb * tile_b                        # global batch offset of this chunk

    @pl.when(kb == 0)
    def _init():
        vals_ref[...] = jnp.full(vals_ref.shape, jnp.inf, vals_ref.dtype)
        idx_ref[...] = jnp.zeros(idx_ref.shape, jnp.int32)

    best = vals_ref[...]
    best_idx = idx_ref[...]

    def step(b, best, best_idx):
        db = jnp.abs(pred_ref[b] - target_ref[b])       # (tile_m, 128), input dtype
        take = db < best                                # strict < -> first occurrence wins
        return (jnp.where(take, db, best),
                jnp.where(take, (b_base + b).astype(jnp.int32), best_idx))

    if tile_b <= 16:
        # Small batch chunk: fully unrolled elementwise scan (pure VPU work).
        for b in range(tile_b):
            best, best_idx = step(b, best, best_idx)
    else:
        def body(b, carry):
            return step(b, *carry)
        best, best_idx = lax.fori_loop(0, tile_b, body, (best, best_idx))

    vals_ref[...] = best
    idx_ref[...] = best_idx


def _choose_tiles(B, M, itemsize, budget):
    """Pick (tile_b, tile_m): tile_b batch rows, tile_m 128-lane feature rows,
    keeping 2 double-buffered inputs + 2 outputs under `budget` bytes."""
    m_full = max(8, ((M + 7) // 8) * 8)
    tile_b = min(B, 64)                                  # chunk very large batches
    per_m_row = (2 * 2 * tile_b * 128 * itemsize         # pred + target, 2 buffers each
                 + 2 * 2 * 128 * (itemsize + 4))         # vals + idx outputs
    tile_m = max(8, (budget // per_m_row) // 8 * 8)
    tile_m = min(tile_m, m_full)
    # Prefer >= 2 feature tiles on non-tiny inputs so v7x's two TensorCores
    # both get work (harmless extra loop iteration on 1-TC v5e/v6e).
    total_in_bytes = 2 * B * M * 128 * itemsize
    if tile_m >= m_full and total_in_bytes > (1 << 20):
        tile_m = max(8, (((m_full + 1) // 2) + 7) // 8 * 8)
    return tile_b, tile_m


def min_loss(pred, target, *, tile_m=None, tile_b=None,
             vmem_budget_bytes=_DEFAULT_VMEM_BUDGET):
    """Returns (values, indices) of |pred - target|.min(axis=0)."""
    assert pred.shape == target.shape, "pred and target must have the same shape"
    assert jnp.issubdtype(pred.dtype, jnp.floating), "expects floating-point inputs"

    B = int(pred.shape[0])
    rest = tuple(int(s) for s in pred.shape[1:])
    N = 1
    for s in rest:
        N *= s

    itemsize = jnp.dtype(pred.dtype).itemsize
    M0 = (N + 127) // 128                                # feature rows of 128 lanes

    tb, tm = _choose_tiles(B, M0, itemsize, vmem_budget_bytes)
    if tile_b is None:
        tile_b = tb
    if tile_m is None:
        tile_m = tm
    tile_m = max(8, (tile_m // 8) * 8)
    tile_b = max(1, min(tile_b, B))

    grid_m = -(-M0 // tile_m)
    grid_b = -(-B // tile_b)
    M = grid_m * tile_m                                  # padded feature rows
    Bp = grid_b * tile_b                                 # padded batch
    Np = M * 128

    pred2 = pred.reshape(B, N)
    target2 = target.reshape(B, N)
    if Np != N:
        # Feature padding is sliced off afterwards; values don't matter.
        pred2 = jnp.pad(pred2, ((0, 0), (0, Np - N)))
        target2 = jnp.pad(target2, ((0, 0), (0, Np - N)))
    if Bp != B:
        # Padded batch rows give |inf - 0| = inf -> never win the strict-< scan.
        pred2 = jnp.pad(pred2, ((0, Bp - B), (0, 0)), constant_values=jnp.inf)
        target2 = jnp.pad(target2, ((0, Bp - B), (0, 0)))
    pred3 = pred2.reshape(Bp, M, 128)
    target3 = target2.reshape(Bp, M, 128)

    in_spec = pl.BlockSpec((tile_b, tile_m, 128), lambda j, kb: (kb, j, 0))
    out_spec = pl.BlockSpec((tile_m, 128), lambda j, kb: (j, 0))  # resident over kb

    vals, idx = pl.pallas_call(
        _minloss_kernel,
        out_shape=(
            jax.ShapeDtypeStruct((M, 128), pred.dtype),
            jax.ShapeDtypeStruct((M, 128), jnp.int32),
        ),
        grid_spec=pltpu.PrefetchScalarGridSpec(
            num_scalar_prefetch=0,
            grid=(grid_m, grid_b),                       # reduction (batch) axis last
            in_specs=[in_spec, in_spec],
            out_specs=(out_spec, out_spec),
        ),
        compiler_params=pltpu.CompilerParams(
            dimension_semantics=("parallel", "arbitrary")),
    )(pred3, target3)

    vals = vals.reshape(Np)[:N].reshape(rest)
    idx = idx.reshape(Np)[:N].reshape(rest)
    return vals, idx


if __name__ == "__main__":
    key = jax.random.PRNGKey(0)
    k1, k2 = jax.random.split(key)
    B, C, H, W = 2, 4, 16, 16
    pred = jax.random.normal(k1, (B, C, H, W), dtype=jnp.float32)
    target = jax.random.normal(k2, (B, C, H, W), dtype=jnp.float32)

    vals, idx = min_loss(pred, target)
    jax.block_until_ready((vals, idx))

    # Reference check in plain JAX.
    d = jnp.abs(pred - target)
    ref_vals = jnp.min(d, axis=0)
    ref_idx = jnp.argmin(d, axis=0).astype(jnp.int32)
    assert bool(jnp.allclose(vals, ref_vals)), "values mismatch"
    assert bool(jnp.array_equal(idx, ref_idx)), "indices mismatch"

    print("KERNEL_OK")
</pallas_src>

<mosaic_0001>
module attributes {stable_mosaic.version = 11 : i64} {
  func.func @_minloss_kernel(%arg0: i32, %arg1: i32, %arg2: memref<2x8x128xf32, #tpu.memory_space<vmem>>, %arg3: memref<2x8x128xf32, #tpu.memory_space<vmem>>, %arg4: memref<8x128xf32, #tpu.memory_space<vmem>>, %arg5: memref<8x128xi32, #tpu.memory_space<vmem>>) attributes {dimension_semantics = [#tpu.dimension_semantics<parallel>, #tpu.dimension_semantics<arbitrary>], iteration_bounds = array<i64: 1, 1>, scalar_prefetch = 0 : i64, scratch_operands = 0 : i64, tpu.core_type = #tpu.core_type<tc>, window_params = [{transform_indices = @transform_0, window_bounds = array<i64: 2, 8, 128>}, {transform_indices = @transform_1, window_bounds = array<i64: 2, 8, 128>}, {transform_indices = @transform_2, window_bounds = array<i64: 8, 128>}, {transform_indices = @transform_3, window_bounds = array<i64: 8, 128>}]} {
    %c2_i32 = arith.constant 2 : i32
    %0 = arith.muli %arg1, %c2_i32 : i32
    %c0_i32 = arith.constant 0 : i32
    %1 = arith.cmpi eq, %arg1, %c0_i32 : i32
    %2 = arith.extui %1 : i1 to i32
    %c0_i32_0 = arith.constant 0 : i32
    %3 = arith.cmpi ne, %2, %c0_i32_0 : i32
    scf.if %3 {
      %cst = arith.constant 0x7F800000 : f32
      %30 = vector.broadcast %cst : f32 to vector<8x128xf32>
      %c0_20 = arith.constant 0 : index
      %c0_21 = arith.constant 0 : index
      %31 = vector.load %arg4[%c0_20, %c0_21] : memref<8x128xf32, #tpu.memory_space<vmem>>, vector<8x128xf32>
      tpu.vector_store %arg4[%c0_20, %c0_21], %30 {strides = array<i32>} : memref<8x128xf32, #tpu.memory_space<vmem>>, vector<8x128xf32>,
      %c0_i32_22 = arith.constant 0 : i32
      %32 = vector.broadcast %c0_i32_22 : i32 to vector<8x128xi32>
      %c0_23 = arith.constant 0 : index
      %c0_24 = arith.constant 0 : index
      %33 = vector.load %arg5[%c0_23, %c0_24] : memref<8x128xi32, #tpu.memory_space<vmem>>, vector<8x128xi32>
      tpu.vector_store %arg5[%c0_23, %c0_24], %32 {strides = array<i32>} : memref<8x128xi32, #tpu.memory_space<vmem>>, vector<8x128xi32>,
    } else {
    }
    %c0 = arith.constant 0 : index
    %c0_1 = arith.constant 0 : index
    %4 = vector.load %arg4[%c0, %c0_1] : memref<8x128xf32, #tpu.memory_space<vmem>>, vector<8x128xf32>
    %c0_2 = arith.constant 0 : index
    %c0_3 = arith.constant 0 : index
    %5 = vector.load %arg5[%c0_2, %c0_3] : memref<8x128xi32, #tpu.memory_space<vmem>>, vector<8x128xi32>
    %c0_4 = arith.constant 0 : index
    %c0_5 = arith.constant 0 : index
    %c0_6 = arith.constant 0 : index
    %6 = vector.load %arg2[%c0_4, %c0_5, %c0_6] : memref<2x8x128xf32, #tpu.memory_space<vmem>>, vector<1x8x128xf32>
    %7 = vector.shape_cast %6 : vector<1x8x128xf32> to vector<8x128xf32>
    %c0_7 = arith.constant 0 : index
    %c0_8 = arith.constant 0 : index
    %c0_9 = arith.constant 0 : index
    %8 = vector.load %arg3[%c0_7, %c0_8, %c0_9] : memref<2x8x128xf32, #tpu.memory_space<vmem>>, vector<1x8x128xf32>
    %9 = vector.shape_cast %8 : vector<1x8x128xf32> to vector<8x128xf32>
    %10 = arith.subf %7, %9 : vector<8x128xf32>
    %11 = math.absf %10 : vector<8x128xf32>
    %12 = arith.cmpf olt, %11, %4 : vector<8x128xf32>
    %13 = arith.select %12, %11, %4 : vector<8x128xi1>, vector<8x128xf32>
    %c0_i32_10 = arith.constant 0 : i32
    %14 = arith.addi %0, %c0_i32_10 : i32
    %15 = vector.broadcast %14 : i32 to vector<8x128xi32>
    %16 = arith.select %12, %15, %5 : vector<8x128xi1>, vector<8x128xi32>
    %c1 = arith.constant 1 : index
    %c0_11 = arith.constant 0 : index
    %c0_12 = arith.constant 0 : index
    %17 = vector.load %arg2[%c1, %c0_11, %c0_12] : memref<2x8x128xf32, #tpu.memory_space<vmem>>, vector<1x8x128xf32>
    %18 = vector.shape_cast %17 : vector<1x8x128xf32> to vector<8x128xf32>
    %c1_13 = arith.constant 1 : index
    %c0_14 = arith.constant 0 : index
    %c0_15 = arith.constant 0 : index
    %19 = vector.load %arg3[%c1_13, %c0_14, %c0_15] : memref<2x8x128xf32, #tpu.memory_space<vmem>>, vector<1x8x128xf32>
    %20 = vector.shape_cast %19 : vector<1x8x128xf32> to vector<8x128xf32>
    %21 = arith.subf %18, %20 : vector<8x128xf32>
    %22 = math.absf %21 : vector<8x128xf32>
    %23 = arith.cmpf olt, %22, %13 : vector<8x128xf32>
    %24 = arith.select %23, %22, %13 : vector<8x128xi1>, vector<8x128xf32>
    %c1_i32 = arith.constant 1 : i32
    %25 = arith.addi %0, %c1_i32 : i32
    %26 = vector.broadcast %25 : i32 to vector<8x128xi32>
    %27 = arith.select %23, %26, %16 : vector<8x128xi1>, vector<8x128xi32>
    %c0_16 = arith.constant 0 : index
    %c0_17 = arith.constant 0 : index
    %28 = vector.load %arg4[%c0_16, %c0_17] : memref<8x128xf32, #tpu.memory_space<vmem>>, vector<8x128xf32>
    tpu.vector_store %arg4[%c0_16, %c0_17], %24 {strides = array<i32>} : memref<8x128xf32, #tpu.memory_space<vmem>>, vector<8x128xf32>,
    %c0_18 = arith.constant 0 : index
    %c0_19 = arith.constant 0 : index
    %29 = vector.load %arg5[%c0_18, %c0_19] : memref<8x128xi32, #tpu.memory_space<vmem>>, vector<8x128xi32>
    tpu.vector_store %arg5[%c0_18, %c0_19], %27 {strides = array<i32>} : memref<8x128xi32, #tpu.memory_space<vmem>>, vector<8x128xi32>,
    return
  }
  func.func @transform_0(%arg0: i32, %arg1: i32) -> (i32, i32, i32) {
    %c0_i32 = arith.constant 0 : i32
    %c0_i32_0 = arith.constant 0 : i32
    return %arg1, %arg0, %c0_i32 : i32, i32, i32
  }
  func.func @transform_1(%arg0: i32, %arg1: i32) -> (i32, i32, i32) {
    %c0_i32 = arith.constant 0 : i32
    %c0_i32_0 = arith.constant 0 : i32
    return %arg1, %arg0, %c0_i32 : i32, i32, i32
  }
  func.func @transform_2(%arg0: i32, %arg1: i32) -> (i32, i32) {
    %c0_i32 = arith.constant 0 : i32
    %c0_i32_0 = arith.constant 0 : i32
    return %arg0, %c0_i32 : i32, i32
  }
  func.func @transform_3(%arg0: i32, %arg1: i32) -> (i32, i32) {
    %c0_i32 = arith.constant 0 : i32
    %c0_i32_0 = arith.constant 0 : i32
    return %arg0, %c0_i32 : i32, i32
  }
}

</mosaic_0001>

<llo_original>
// kernel: tpu_custom_call.1
$region0: #{tpu_custom_call.1}
  #allocation0 [shape = 'u32[]', space=smem, size = 0x4, offset = 0x4, fixed_abs, tag = 'smem constant byte address 0x4 - core index']
  #allocation1 [shape = 'u32[144,128]{1,0:T(1,128)}', space=vmem, size = 0x12000, scoped, tag = 'internal scratch']
  %s0 = inlined_call_operand.hbm [shape: f32[2,8,128], index: 0, kind: input, shape index: {}]
  %s1 = inlined_call_operand.hbm [shape: f32[2,8,128], index: 1, kind: input, shape index: {}]
  %s2 = inlined_call_operand.hbm [shape: f32[8,128], index: 2, kind: output, shape index: {0}]
  %s3 = inlined_call_operand.hbm [shape: s32[8,128], index: 3, kind: output, shape index: {1}]
  %4 = xla_tuple %s2, %s3
  %s5 = sld [smem:[#allocation0]]
  $region38: #{tpu_custom_call.1} parent=0
    _
  %s7 = ssub.s32 1, %s5
  %s8 = scalar_select 0, %s7, %s5
  $region1: #{tpu_custom_call.1} parent=0
    #allocation2 [shape = 'u8[8192]{0}', space=vmem, size = 0x2000, scoped, tag = 'input window, operand 0, single buffered']
    #allocation3 [shape = 's32[1]{0}', space=sflag, size = 0x4, scoped, tag = 'scoped memory for tpu_custom_call.1']
    #allocation4 [shape = 's32[1]{0}', space=sflag, size = 0x4, scoped, tag = 'scoped memory for tpu_custom_call.1']
    #allocation5 [shape = 'u8[8192]{0}', space=vmem, size = 0x2000, scoped, tag = 'input window, operand 1, single buffered']
    #allocation6 [shape = 's32[1]{0}', space=sflag, size = 0x4, scoped, tag = 'scoped memory for tpu_custom_call.1']
    #allocation7 [shape = 'u8[4096]{0}', space=vmem, size = 0x1000, scoped, tag = 'output window, operand 0, single buffered']
    #allocation8 [shape = 'u8[4096]{0}', space=vmem, size = 0x1000, scoped, tag = 'output window, operand 1, single buffered']
    #allocation9 [shape = 's32[1]{0}', space=sflag, size = 0x4, scoped, tag = 'scoped memory for tpu_custom_call.1']
    %9 = vsyncpa [#allocation3], 0
    %10 = vsyncpa [#allocation6], 0
    %11 = vsyncpa [#allocation4], 0
    %12 = vsyncpa [#allocation9], 0
    // Predicated region
    $region2: #{tpu_custom_call.1} parent=1 // pred_check
      _
    $region3: #{tpu_custom_call.1} parent=1 // pred_check_branch
      %14 = sbr.rel (0) target = $region5
    $region4: #{tpu_custom_call.1} parent=1 // pred_region
      %s16 = ssub.s32 256, 256
      %17 = vsyncadd [#allocation3], %s16
      %s18 = sshll.u32 [#allocation2], 4
      %s19 = int_to_ptr.vmem [resolvable:$true] %s18
      %24 = dma.hbm_to_vmem [thread:$0]  %s0, 256, %s19, [#allocation3], 128, 128, 8
    $region5: #{tpu_custom_call.1} parent=1 // pred_fallthru
      _
    // Predicated region
    $region6: #{tpu_custom_call.1} parent=1 // pred_check
      _
    $region7: #{tpu_custom_call.1} parent=1 // pred_check_branch
      %26 = sbr.rel (0) target = $region9
    $region8: #{tpu_custom_call.1} parent=1 // pred_region
      %s28 = ssub.s32 256, 256
      %29 = vsyncadd [#allocation6], %s28
      %s30 = sshll.u32 [#allocation5], 4
      %s31 = int_to_ptr.vmem [resolvable:$true] %s30
      %36 = dma.hbm_to_vmem [thread:$0]  %s1, 256, %s31, [#allocation6], 128, 128, 8
    $region9: #{tpu_custom_call.1} parent=1 // pred_fallthru
      _
    // Predicated region
    $region10: #{tpu_custom_call.1} parent=1 // pred_check
      _
    $region11: #{tpu_custom_call.1} parent=1 // pred_check_branch
      %38 = sbr.rel (0) target = $region13
    $region12: #{tpu_custom_call.1} parent=1 // pred_region
      %39 = dma.done [#allocation3], 256
    $region13: #{tpu_custom_call.1} parent=1 // pred_fallthru
      _
    // Predicated region
    $region14: #{tpu_custom_call.1} parent=1 // pred_check
      _
    $region15: #{tpu_custom_call.1} parent=1 // pred_check_branch
      %41 = sbr.rel (0) target = $region17
    $region16: #{tpu_custom_call.1} parent=1 // pred_region
      %42 = dma.done [#allocation6], 256
    $region17: #{tpu_custom_call.1} parent=1 // pred_fallthru
      _
    %s43 = smul.u32 0, 2
    %p44 = scmp.eq.s32.totalorder 0, 0
    // Predicated region
    $region18: #{tpu_custom_call.1} parent=1 // pred_check
      %p45 = pneg %p44
    $region19: #{tpu_custom_call.1} parent=1 // pred_check_branch
      %47 = sbr.rel (%p45) target = $region21
    $region20: #{tpu_custom_call.1} parent=1 // pred_region
      %48 = vst [vmem:[#allocation7] sm:$0xff] inf
      %49 = vst [vmem:[#allocation8] sm:$0xff] 0
    $region21: #{tpu_custom_call.1} parent=1 // pred_fallthru
      _
    %v50 = vld [vmem:[#allocation7] sm:$0xff]
    %v51 = vld [vmem:[#allocation8] sm:$0xff]
    %v52 = vld [vmem:[#allocation2] sm:$0xff]
    %v53 = vld [vmem:[#allocation5] sm:$0xff]
    %v54 = vsub.f32 %v52, %v53
    %v55 = vand.u32 2147483647, %v54
    %vm56 = vcmp.lt.f32.partialorder %v55, %v50
    %v57 = vsel %vm56, %v55, %v50
    %v58 = vstv %s43
    %v59 = vsel %vm56, %v58, %v51
    %s60 = scalar_lea.vmem [#allocation2], 8
    %v61 = vld [vmem:[%s60] sm:$0xff]
    %s62 = scalar_lea.vmem [#allocation5], 8
    %v63 = vld [vmem:[%s62] sm:$0xff]
    %v64 = vsub.f32 %v61, %v63
    %v65 = vand.u32 2147483647, %v64
    %vm66 = vcmp.lt.f32.partialorder %v65, %v57
    %v67 = vsel %vm66, %v65, %v57
    %s68 = sadd.s32 %s43, 1
    %v69 = vstv %s68
    %v70 = vsel %vm66, %v69, %v59
    %71 = vst [vmem:[#allocation7] sm:$0xff] %v67
    %72 = vst [vmem:[#allocation8] sm:$0xff] %v70
    // Predicated region
    $region22: #{tpu_custom_call.1} parent=1 // pred_check
      _
    $region23: #{tpu_custom_call.1} parent=1 // pred_check_branch
      %74 = sbr.rel (0) target = $region25
    $region24: #{tpu_custom_call.1} parent=1 // pred_region
      %s76 = ssub.s32 128, 128
      %77 = vsyncadd [#allocation4], %s76
      %s79 = sshll.u32 [#allocation7], 4
      %s80 = int_to_ptr.vmem [resolvable:$true] %s79
      %82 = dma.vmem_to_hbm [thread:$0]  %s80, 128, %s2, [#allocation4]
    $region25: #{tpu_custom_call.1} parent=1 // pred_fallthru
      _
    // Predicated region
    $region26: #{tpu_custom_call.1} parent=1 // pred_check
      _
    $region27: #{tpu_custom_call.1} parent=1 // pred_check_branch
      %84 = sbr.rel (0) target = $region29
    $region28: #{tpu_custom_call.1} parent=1 // pred_region
      %s86 = ssub.s32 128, 128
      %87 = vsyncadd [#allocation9], %s86
      %s89 = sshll.u32 [#allocation8], 4
      %s90 = int_to_ptr.vmem [resolvable:$true] %s89
      %92 = dma.vmem_to_hbm [thread:$0]  %s90, 128, %s3, [#allocation9]
    $region29: #{tpu_custom_call.1} parent=1 // pred_fallthru
      _
    // Predicated region
    $region30: #{tpu_custom_call.1} parent=1 // pred_check
      _
    $region31: #{tpu_custom_call.1} parent=1 // pred_check_branch
      %94 = sbr.rel (0) target = $region33
    $region32: #{tpu_custom_call.1} parent=1 // pred_region
      %95 = dma.done [#allocation4], 128
    $region33: #{tpu_custom_call.1} parent=1 // pred_fallthru
      _
    // Predicated region
    $region34: #{tpu_custom_call.1} parent=1 // pred_check
      _
    $region35: #{tpu_custom_call.1} parent=1 // pred_check_branch
      %97 = sbr.rel (0) target = $region37
    $region36: #{tpu_custom_call.1} parent=1 // pred_region
      %98 = dma.done [#allocation9], 128
    $region37: #{tpu_custom_call.1} parent=1 // pred_fallthru
      _
    %99 = vsyncpa [#allocation3], 1
    %100 = vsyncpa [#allocation6], 1
    %101 = vsyncpa [#allocation4], 1
    %102 = vsyncpa [#allocation9], 1

</llo_original>
